<compile_context>
chip_gen: v7x
topology: tpu7x:2x2x1
jax: 0.10.0
libtpu: 0.0.40
codegen_flags: <defaults>
</compile_context>

<pallas_src>
import jax
import jax.numpy as jnp
from jax.experimental import pallas as pl
from jax.experimental.pallas import tpu as pltpu


def _masked_average_kernel(x_ref, keep_ref, o_ref):
    """x_ref: (B, L, D) f32, keep_ref: (B, L, 1) f32 (1.0 == keep), o_ref: (B, 1, D)."""
    x = x_ref[...]                                        # (B, L, D)
    keep = keep_ref[...]                                  # (B, L, 1)

    # softmax(where(mask, -inf, 0), axis=1) == keep / sum(keep)   (exact)
    denom = jnp.sum(keep, axis=1, keepdims=True)          # (B, 1, 1)  sublane reduce
    w = keep * pl.reciprocal(denom, approx=True)          # (B, L, 1)  EUP vrcp (free slot)

    # Weighted sum over the sequence axis: (B, L, 1) * (B, L, D) -> (B, 1, D).
    out = jnp.sum(x * w, axis=1, keepdims=True)           # VPU mul + sublane reduce
    o_ref[...] = out.astype(o_ref.dtype)


def average_aggregator(x, x_mask):
    """Pallas implementation of AverageAggregator.forward.

    x:      (B, L, D) float array
    x_mask: (B, L) bool array, True == masked/ignored position
    returns (B, 1, D): mean of x over unmasked positions.
    """
    B, L, D = x.shape

    # Precompute keep-weights in the wrapper so the kernel body has no
    # compare/select on the mask (perf review item).
    keep = jnp.where(x_mask, 0.0, 1.0).astype(jnp.float32)[..., None]   # (B, L, 1)

    return pl.pallas_call(
        _masked_average_kernel,
        out_shape=jax.ShapeDtypeStruct((B, 1, D), x.dtype),
        # Single invocation: no grid, whole arrays in VMEM.  At these shapes the
        # per-grid-step fixed cost (~0.35 us) and extra DMA descriptors would
        # dominate, so collapsing the grid is the biggest lever.
        # NOTE: for large B*L*D re-introduce a grid over B (and/or L) and check
        # the 64 MiB VMEM budget on v7x before v5e/v6e would need it.
        in_specs=[
            pl.BlockSpec(memory_space=pltpu.MemorySpace.VMEM),   # x
            pl.BlockSpec(memory_space=pltpu.MemorySpace.VMEM),   # keep weights
        ],
        out_specs=pl.BlockSpec(memory_space=pltpu.MemorySpace.VMEM),
    )(x, keep)


if __name__ == "__main__":
    B, L, D = 2, 8, 32

    root = jax.random.PRNGKey(0)
    x = jax.random.normal(root, (B, L, D), jnp.float32)

    # True == padded/ignored key; pad the last 3 positions of batch 1.
    x_mask = jnp.zeros((B, L), dtype=bool).at[1, L - 3:].set(True)

    out = average_aggregator(x, x_mask)
    jax.block_until_ready(out)

    # Pure-JAX reference of the original module's math.
    logits = jnp.where(x_mask, -jnp.inf, 0.0)
    w_ref = jax.nn.softmax(logits, axis=1)                        # (B, L)
    ref = jnp.einsum("bl,bld->bd", w_ref, x)[:, None, :]          # (B, 1, D)

    assert out.shape == (B, 1, D) and out.dtype == jnp.float32
    assert bool(jnp.all(jnp.isfinite(out)))
    # approx reciprocal -> loose but meaningful tolerance.
    assert bool(jnp.allclose(out, ref, rtol=5e-3, atol=5e-3))
    print("KERNEL_OK")
</pallas_src>

<mosaic_0001>
module attributes {stable_mosaic.version = 11 : i64} {
  func.func @_masked_average_kernel(%arg0: memref<2x8x32xf32, #tpu.memory_space<vmem>>, %arg1: memref<2x8x1xf32, #tpu.memory_space<vmem>>, %arg2: memref<2x1x32xf32, #tpu.memory_space<vmem>>) attributes {dimension_semantics = [], scalar_prefetch = 0 : i64, scratch_operands = 0 : i64, tpu.core_type = #tpu.core_type<tc>} {
    %c0 = arith.constant 0 : index
    %c0_0 = arith.constant 0 : index
    %c0_1 = arith.constant 0 : index
    %0 = vector.load %arg0[%c0, %c0_0, %c0_1] : memref<2x8x32xf32, #tpu.memory_space<vmem>>, vector<2x8x32xf32>
    %c0_2 = arith.constant 0 : index
    %c0_3 = arith.constant 0 : index
    %c0_4 = arith.constant 0 : index
    %1 = vector.load %arg1[%c0_2, %c0_3, %c0_4] : memref<2x8x1xf32, #tpu.memory_space<vmem>>, vector<2x8x1xf32>
    %cst = arith.constant dense<0.000000e+00> : vector<2x1xf32>
    %2 = vector.multi_reduction <add>, %1, %cst [1] : vector<2x8x1xf32> to vector<2x1xf32>
    %3 = vector.shape_cast %2 : vector<2x1xf32> to vector<2x1x1xf32>
    %4 = tpu.reciprocal %3 {approx = true} : vector<2x1x1xf32> -> vector<2x1x1xf32>
    %5 = vector.broadcast %4 : vector<2x1x1xf32> to vector<2x8x1xf32>
    %6 = arith.mulf %1, %5 : vector<2x8x1xf32>
    %7 = vector.broadcast %6 : vector<2x8x1xf32> to vector<2x8x32xf32>
    %8 = arith.mulf %0, %7 : vector<2x8x32xf32>
    %cst_5 = arith.constant dense<0.000000e+00> : vector<2x32xf32>
    %9 = vector.multi_reduction <add>, %8, %cst_5 [1] : vector<2x8x32xf32> to vector<2x32xf32>
    %10 = vector.shape_cast %9 : vector<2x32xf32> to vector<2x1x32xf32>
    %c0_6 = arith.constant 0 : index
    %c0_7 = arith.constant 0 : index
    %c0_8 = arith.constant 0 : index
    %11 = vector.load %arg2[%c0_6, %c0_7, %c0_8] : memref<2x1x32xf32, #tpu.memory_space<vmem>>, vector<2x1x32xf32>
    tpu.vector_store %arg2[%c0_6, %c0_7, %c0_8], %10 {strides = array<i32>} : memref<2x1x32xf32, #tpu.memory_space<vmem>>, vector<2x1x32xf32>,
    return
  }
}

</mosaic_0001>

<llo_original>
// kernel: tpu_custom_call.1
$region0: #{tpu_custom_call.1}
  #allocation0 [shape = 'u32[]', space=smem, size = 0x4, offset = 0x4, fixed_abs, tag = 'smem constant byte address 0x4 - core index']
  #allocation1 [shape = 'u32[144,128]{1,0:T(1,128)}', space=vmem, size = 0x12000, scoped, tag = 'internal scratch']
  %s0 = inlined_call_operand.vmem [shape: f32[2,8,32], index: 0, kind: input, shape index: {}]
  %s1 = inlined_call_operand.vmem [shape: f32[2,8,1], index: 1, kind: input, shape index: {}]
  %s2 = inlined_call_operand.hbm [shape: f32[2,1,32], index: 2, kind: output, shape index: {}]
  %s3 = sld [smem:[#allocation0]]
  $region18: #{tpu_custom_call.1} parent=0
    _
  %s5 = ssub.s32 1, %s3
  %s6 = scalar_select 0, %s5, %s3
  $region1: #{tpu_custom_call.1} parent=0
    #allocation2 [shape = 'u8[1024]{0}', space=vmem, size = 0x400, scoped, tag = 'output window, operand 0, single buffered']
    #allocation3 [shape = 's32[1]{0}', space=sflag, size = 0x4, scoped, tag = 'scoped memory for tpu_custom_call.1']
    %7 = vsyncpa [#allocation3], 0
    // Predicated region
    $region2: #{tpu_custom_call.1} parent=1 // pred_check
      _
    $region3: #{tpu_custom_call.1} parent=1 // pred_check_branch
      %9 = sbr.rel (0) target = $region5
    $region4: #{tpu_custom_call.1} parent=1 // pred_region
      _
    $region5: #{tpu_custom_call.1} parent=1 // pred_fallthru
      _
    // Predicated region
    $region6: #{tpu_custom_call.1} parent=1 // pred_check
      _
    $region7: #{tpu_custom_call.1} parent=1 // pred_check_branch
      %11 = sbr.rel (0) target = $region9
    $region8: #{tpu_custom_call.1} parent=1 // pred_region
      _
    $region9: #{tpu_custom_call.1} parent=1 // pred_fallthru
      _
    %v12 = vld [vmem:[%s0] sm:$0xff]
    %v13 = vld [vmem:[%s0 + $0x8] sm:$0xff]
    %v14 = vld [vmem:[%s1] sm:$0xff]
    %v15 = vld [vmem:[%s1 + $0x8] sm:$0xff]
    %vm16 = vcmask 7168
    %v17 = vsel %vm16, %v14, 0.0
    %v18 = vrot.slane %v17, 4
    %v19 = vadd.f32 %v17, %v18
    %v20 = vrot.slane %v19, 2
    %v21 = vadd.f32 %v19, %v20
    %v22 = vrot.slane %v21, 1
    %v23 = vadd.f32 %v21, %v22
    %v24 = vsel %vm16, %v15, 0.0
    %v25 = vrot.slane %v24, 4
    %v26 = vadd.f32 %v24, %v25
    %v27 = vrot.slane %v26, 2
    %v28 = vadd.f32 %v26, %v27
    %v29 = vrot.slane %v28, 1
    %v30 = vadd.f32 %v28, %v29
    %v31 = vrcp.pop %v23
    %v32 = vrcp.pop %v30
    %v33 = vmul.f32 %v14, %v31
    %v34 = vmul.f32 %v15, %v32
    %36 = vset.pattern.permute.xlu0 0
    %37 = vperm.xlu0 %36, %v33
    %v38 = vpop.permute.xlu0 %37
    %41 = vset.pattern.permute.xlu0 0
    %42 = vperm.xlu0 %41, %v34
    %v43 = vpop.permute.xlu0 %42
    %v45 = vmul.f32 %v12, %v38
    %v46 = vmul.f32 %v13, %v43
    %vm47 = vcmask 261120
    %v48 = vsel %vm47, %v45, 0.0
    %v49 = vrot.slane %v48, 4
    %v50 = vadd.f32 %v48, %v49
    %v51 = vrot.slane %v50, 2
    %v52 = vadd.f32 %v50, %v51
    %v53 = vrot.slane %v52, 1
    %v54 = vadd.f32 %v52, %v53
    %v55 = vsel %vm47, %v46, 0.0
    %v56 = vrot.slane %v55, 4
    %v57 = vadd.f32 %v55, %v56
    %v58 = vrot.slane %v57, 2
    %v59 = vadd.f32 %v57, %v58
    %v60 = vrot.slane %v59, 1
    %v61 = vadd.f32 %v59, %v60
    %vm62 = vcmask 253952
    %63 = vst.msk [vmem:[#allocation2] sm:$0x1] %vm62, %v54
    %64 = vst.msk [vmem:[#allocation2 + $0x1] sm:$0x1] %vm62, %v61
    // Predicated region
    $region10: #{tpu_custom_call.1} parent=1 // pred_check
      _
    $region11: #{tpu_custom_call.1} parent=1 // pred_check_branch
      %66 = sbr.rel (0) target = $region13
    $region12: #{tpu_custom_call.1} parent=1 // pred_region
      %s68 = ssub.s32 32, 32
      %69 = vsyncadd [#allocation3], %s68
      %s70 = sshll.u32 [#allocation2], 4
      %s71 = int_to_ptr.vmem [resolvable:$true] %s70
      %76 = dma.vmem_to_hbm [thread:$0]  %s71, 32, %s2, [#allocation3], 16, 16, 1
    $region13: #{tpu_custom_call.1} parent=1 // pred_fallthru
      _
    // Predicated region
    $region14: #{tpu_custom_call.1} parent=1 // pred_check
      _
    $region15: #{tpu_custom_call.1} parent=1 // pred_check_branch
      %78 = sbr.rel (0) target = $region17
    $region16: #{tpu_custom_call.1} parent=1 // pred_region
      %79 = dma.done [#allocation3], 32
    $region17: #{tpu_custom_call.1} parent=1 // pred_fallthru
      _
    %80 = vsyncpa [#allocation3], 1

</llo_original>
